<compile_context>
chip_gen: v7x
topology: tpu7x:2x2x1
jax: 0.10.0
libtpu: 0.0.40
codegen_flags: <defaults>
</compile_context>

<pallas_src>
import functools
import numpy as np
import jax
import jax.numpy as jnp
from jax.experimental import pallas as pl
from jax.experimental.pallas import tpu as pltpu


# ---------------------------------------------------------------------------
# tiling helpers
# ---------------------------------------------------------------------------

def _row_tiling(m, max_tile=512):
    """Pick a row tile (multiple of 8 when possible) and padded row count."""
    tm = min(max_tile, m)
    if m >= 8:
        tm = (tm // 8) * 8
    mp = ((m + tm - 1) // tm) * tm
    return mp, tm


def _pad_rows(x2, mp):
    m = x2.shape[0]
    if mp != m:
        x2 = jnp.pad(x2, ((0, mp - m),) + ((0, 0),) * (x2.ndim - 1))
    return x2


# ---------------------------------------------------------------------------
# Pallas kernels
# ---------------------------------------------------------------------------

def _conv1x1_kernel(x_ref, w_ref, s_ref, b_ref, o_ref, *, act):
    """o = act((x @ w) * scale + bias)  -- bf16 MXU operands, f32 accumulate."""
    y = jnp.dot(x_ref[...], w_ref[...], preferred_element_type=jnp.float32)
    y = y * s_ref[...] + b_ref[...]
    if act == "relu":
        y = jnp.maximum(y, 0.0)
    o_ref[...] = y.astype(o_ref.dtype)


def _conv3x3_kernel(x_ref, w_ref, s_ref, b_ref, o_ref, acc_ref, *,
                    groups, cpg_in, cpg_out):
    """Per-tap accumulation of a grouped 3x3 conv; BN+ReLU epilogue on last tap."""
    t = pl.program_id(1)

    @pl.when(t == 0)
    def _():
        acc_ref[...] = jnp.zeros_like(acc_ref)

    x = x_ref[0]                         # (tm, Cin)                 bf16
    w = w_ref[0]                         # (G, cpg_in, cpg_out)      bf16
    parts = [
        jnp.dot(x[:, g * cpg_in:(g + 1) * cpg_in], w[g],
                preferred_element_type=jnp.float32)
        for g in range(groups)
    ]
    acc_ref[...] += jnp.concatenate(parts, axis=-1)

    @pl.when(t == pl.num_programs(1) - 1)
    def _():
        y = acc_ref[...] * s_ref[...] + b_ref[...]
        o_ref[...] = jnp.maximum(y, 0.0).astype(o_ref.dtype)


def _se_gate_kernel(h_ref, w1_ref, b1_ref, w2_ref, b2_ref, g_ref, sum_ref, *, hw):
    """Global-avg-pool (accumulated over the grid) + FC-ReLU-FC-sigmoid gate."""
    t = pl.program_id(0)

    @pl.when(t == 0)
    def _():
        sum_ref[...] = jnp.zeros_like(sum_ref)

    sum_ref[...] += jnp.sum(h_ref[...].astype(jnp.float32), axis=1)

    @pl.when(t == pl.num_programs(0) - 1)
    def _():
        pooled = sum_ref[...] * (1.0 / hw)
        z = jnp.dot(pooled, w1_ref[...], preferred_element_type=jnp.float32)
        z = jnp.maximum(z + b1_ref[...], 0.0)
        y = jnp.dot(z, w2_ref[...], preferred_element_type=jnp.float32) + b2_ref[...]
        # sigmoid: exp on the EUP + approximate reciprocal (frees VALU slots)
        g_ref[...] = pl.reciprocal(1.0 + jnp.exp(-y), approx=True)


def _conv1x1_gate_res_relu_kernel(x_ref, g_ref, w_ref, s_ref, b_ref, r_ref, o_ref):
    """o = relu(((x * gate) @ w) * scale + bias + res) -- fused SE/conv-c/residual."""
    xg = (x_ref[0].astype(jnp.float32) * g_ref[0]).astype(jnp.bfloat16)
    y = jnp.dot(xg, w_ref[...], preferred_element_type=jnp.float32)
    y = y * s_ref[...] + b_ref[...] + r_ref[0].astype(jnp.float32)
    o_ref[0] = jnp.maximum(y, 0.0).astype(o_ref.dtype)


# ---------------------------------------------------------------------------
# wrappers (layout plumbing only; all hot math runs in the kernels above)
# ---------------------------------------------------------------------------

def conv1x1_bn(x_nhwc, params, stride=1, act="none", out_dtype=jnp.bfloat16):
    """Folded 1x1 conv + BN (+ ReLU).  w: (Cout, Cin, 1, 1) torch layout."""
    w, scale, bias = params
    if stride > 1:
        x_nhwc = x_nhwc[:, ::stride, ::stride, :]
    n, h, ww, cin = x_nhwc.shape
    cout = w.shape[0]
    m = n * h * ww
    mp, tm = _row_tiling(m)
    x2 = _pad_rows(x_nhwc.reshape(m, cin), mp).astype(jnp.bfloat16)
    w2 = jnp.transpose(w[:, :, 0, 0], (1, 0)).astype(jnp.bfloat16)

    # TODO(synk): for large Cin/Cout add a K grid axis + f32 acc scratch and set
    # vmem_limit_bytes so the resident weight slab stays under v7x's 64 MiB VMEM;
    # pad channels to 128 lanes once per stage for lane-dense stores.
    y = pl.pallas_call(
        functools.partial(_conv1x1_kernel, act=act),
        out_shape=jax.ShapeDtypeStruct((mp, cout), out_dtype),
        grid=(mp // tm,),
        in_specs=[
            pl.BlockSpec((tm, cin), lambda i: (i, 0)),
            pl.BlockSpec((cin, cout), lambda i: (0, 0)),
            pl.BlockSpec((1, cout), lambda i: (0, 0)),
            pl.BlockSpec((1, cout), lambda i: (0, 0)),
        ],
        out_specs=pl.BlockSpec((tm, cout), lambda i: (i, 0)),
        compiler_params=pltpu.CompilerParams(dimension_semantics=("parallel",)),
    )(x2, w2, scale.reshape(1, cout).astype(jnp.float32),
      bias.reshape(1, cout).astype(jnp.float32))
    return y[:m].reshape(n, h, ww, cout)


def conv3x3_grouped_bn_relu(x_nhwc, params, stride, groups, out_dtype=jnp.bfloat16):
    """Grouped 3x3 conv (padding=1) + folded BN + ReLU via 9-tap accumulation."""
    w, scale, bias = params                        # w: (Cout, Cin//g, 3, 3)
    n, h, ww, cin = x_nhwc.shape
    cout = w.shape[0]
    cpg_in, cpg_out = cin // groups, cout // groups
    ho = (h + 2 - 3) // stride + 1
    wo = (ww + 2 - 3) // stride + 1
    m = n * ho * wo
    mp, tm = _row_tiling(m)

    # 9 shifted/strided views of the padded input, stacked on a leading tap axis.
    # TODO(synk): for stride==1 the taps are pure shifted windows of the padded
    # input and could be fed straight from HBM via Element-offset BlockSpecs
    # (no tap materialization at all).
    xp = jnp.pad(x_nhwc, ((0, 0), (1, 1), (1, 1), (0, 0)))
    taps = []
    for ky in range(3):
        for kx in range(3):
            taps.append(xp[:, ky:ky + stride * (ho - 1) + 1:stride,
                           kx:kx + stride * (wo - 1) + 1:stride, :].reshape(m, cin))
    taps = jnp.stack(taps, axis=0)
    if mp != m:
        taps = jnp.pad(taps, ((0, 0), (0, mp - m), (0, 0)))
    taps = taps.astype(jnp.bfloat16)

    # torch (Cout, cpg_in, 3, 3) -> (9 taps, groups, cpg_in, cpg_out)
    wk = jnp.transpose(w.reshape(groups, cpg_out, cpg_in, 3, 3),
                       (3, 4, 0, 2, 1)).reshape(9, groups, cpg_in, cpg_out)
    wk = wk.astype(jnp.bfloat16)

    y = pl.pallas_call(
        functools.partial(_conv3x3_kernel, groups=groups,
                          cpg_in=cpg_in, cpg_out=cpg_out),
        out_shape=jax.ShapeDtypeStruct((mp, cout), out_dtype),
        grid=(mp // tm, 9),
        in_specs=[
            pl.BlockSpec((1, tm, cin), lambda i, t: (t, i, 0)),
            pl.BlockSpec((1, groups, cpg_in, cpg_out), lambda i, t: (t, 0, 0, 0)),
            pl.BlockSpec((1, cout), lambda i, t: (0, 0)),
            pl.BlockSpec((1, cout), lambda i, t: (0, 0)),
        ],
        out_specs=pl.BlockSpec((tm, cout), lambda i, t: (i, 0)),
        scratch_shapes=[pltpu.VMEM((tm, cout), jnp.float32)],
        compiler_params=pltpu.CompilerParams(
            dimension_semantics=("parallel", "arbitrary")),
    )(taps, wk, scale.reshape(1, cout).astype(jnp.float32),
      bias.reshape(1, cout).astype(jnp.float32))
    return y[:m].reshape(n, ho, wo, cout)


def se_gate(h_nhwc, se_w1, se_w2):
    """SqueezeExcite gate: avg-pool + FC-ReLU + FC-sigmoid -> (N, C) scale."""
    w1, b1 = se_w1                     # (Wse, C), (Wse,)
    w2, b2 = se_w2                     # (C, Wse), (C,)
    n, ho, wo, c = h_nhwc.shape
    hw = ho * wo
    wse = w1.shape[0]
    hwp, thw = _row_tiling(hw, max_tile=1024)
    h3 = h_nhwc.reshape(n, hw, c)
    if hwp != hw:
        h3 = jnp.pad(h3, ((0, 0), (0, hwp - hw), (0, 0)))   # zeros don't bias the mean

    return pl.pallas_call(
        functools.partial(_se_gate_kernel, hw=float(hw)),
        out_shape=jax.ShapeDtypeStruct((n, c), jnp.float32),
        grid=(hwp // thw,),
        in_specs=[
            pl.BlockSpec((n, thw, c), lambda t: (0, t, 0)),
            pl.BlockSpec((c, wse), lambda t: (0, 0)),
            pl.BlockSpec((1, wse), lambda t: (0, 0)),
            pl.BlockSpec((wse, c), lambda t: (0, 0)),
            pl.BlockSpec((1, c), lambda t: (0, 0)),
        ],
        out_specs=pl.BlockSpec((n, c), lambda t: (0, 0)),
        scratch_shapes=[pltpu.VMEM((n, c), jnp.float32)],
        compiler_params=pltpu.CompilerParams(dimension_semantics=("arbitrary",)),
    )(h3, w1.T.astype(jnp.float32), b1.reshape(1, wse).astype(jnp.float32),
      w2.T.astype(jnp.float32), b2.reshape(1, c).astype(jnp.float32))


def conv1x1_gate_res_relu(h_nhwc, gate_nc, params, res_nhwc, out_dtype=jnp.float32):
    """Fused conv 'c' + BN + SE gate + residual add + final ReLU."""
    w, scale, bias = params
    n, ho, wo, cb = h_nhwc.shape
    cout = w.shape[0]
    hw = ho * wo
    hwp, tm = _row_tiling(hw)
    h3 = h_nhwc.reshape(n, hw, cb)
    r3 = res_nhwc.reshape(n, hw, cout)
    if hwp != hw:
        h3 = jnp.pad(h3, ((0, 0), (0, hwp - hw), (0, 0)))
        r3 = jnp.pad(r3, ((0, 0), (0, hwp - hw), (0, 0)))
    g3 = gate_nc.reshape(n, 1, cb).astype(jnp.float32)
    w2 = jnp.transpose(w[:, :, 0, 0], (1, 0)).astype(jnp.bfloat16)

    y = pl.pallas_call(
        _conv1x1_gate_res_relu_kernel,
        out_shape=jax.ShapeDtypeStruct((n, hwp, cout), out_dtype),
        grid=(n, hwp // tm),
        in_specs=[
            pl.BlockSpec((1, tm, cb), lambda b, i: (b, i, 0)),
            pl.BlockSpec((1, 1, cb), lambda b, i: (b, 0, 0)),
            pl.BlockSpec((cb, cout), lambda b, i: (0, 0)),
            pl.BlockSpec((1, cout), lambda b, i: (0, 0)),
            pl.BlockSpec((1, cout), lambda b, i: (0, 0)),
            pl.BlockSpec((1, tm, cout), lambda b, i: (b, i, 0)),
        ],
        out_specs=pl.BlockSpec((1, tm, cout), lambda b, i: (b, i, 0)),
        compiler_params=pltpu.CompilerParams(
            dimension_semantics=("parallel", "parallel")),
    )(h3.astype(jnp.bfloat16), g3, w2,
      scale.reshape(1, cout).astype(jnp.float32),
      bias.reshape(1, cout).astype(jnp.float32),
      r3.astype(jnp.bfloat16))
    return y[:, :hw].reshape(n, ho, wo, cout)


# ---------------------------------------------------------------------------
# parameters and block forward (mirrors BottleneckBlock.forward)
# ---------------------------------------------------------------------------

def conv_bn_params(key, cin, cout, k, groups=1):
    kw, kg, kb, km, kv = jax.random.split(key, 5)
    fan_in = (cin // groups) * k * k
    w = jax.random.normal(kw, (cout, cin // groups, k, k), jnp.float32) / np.sqrt(fan_in)
    gamma = 1.0 + 0.1 * jax.random.normal(kg, (cout,), jnp.float32)
    beta = 0.1 * jax.random.normal(kb, (cout,), jnp.float32)
    mean = 0.1 * jax.random.normal(km, (cout,), jnp.float32)
    var = 1.0 + 0.1 * jnp.abs(jax.random.normal(kv, (cout,), jnp.float32))
    scale = gamma / jnp.sqrt(var + 1e-5)
    bias = beta - mean * scale
    return (w, scale, bias)


def make_block_params(key, w_in, w_out, bottle_ratio=1, groups=1, stride=1, use_se=False):
    w_b = int(round(w_out * bottle_ratio))
    keys = jax.random.split(key, 8)
    p = {"stride": stride, "groups": groups, "use_se": use_se, "proj": None}
    if w_in != w_out or stride != 1:                 # Resample2d: conv1x1(stride)+BN
        p["proj"] = conv_bn_params(keys[0], w_in, w_out, 1)
    p["a"] = conv_bn_params(keys[1], w_in, w_b, 1)
    p["b"] = conv_bn_params(keys[2], w_b, w_b, 3, groups=groups)
    if use_se:
        w_se = max(4, w_b // 4)
        p["se_w1"] = (jax.random.normal(keys[3], (w_se, w_b), jnp.float32) / np.sqrt(w_b),
                      0.1 * jax.random.normal(keys[4], (w_se,), jnp.float32))
        p["se_w2"] = (jax.random.normal(keys[5], (w_b, w_se), jnp.float32) / np.sqrt(w_se),
                      0.1 * jax.random.normal(keys[6], (w_b,), jnp.float32))
    p["c"] = conv_bn_params(keys[7], w_b, w_out, 1)
    return p


def bottleneck_block_forward(x_nchw, p):
    """BottleneckBlock.forward: ReLU(downsample(x) + bottleneck(x)); NCHW in/out."""
    x = jnp.transpose(x_nchw, (0, 2, 3, 1)).astype(jnp.float32)    # NCHW -> NHWC
    stride, groups = p["stride"], p["groups"]

    if p["proj"] is not None:                                      # Resample2d
        res = conv1x1_bn(x, p["proj"], stride=stride, act="none")
    else:                                                          # identity
        res = x.astype(jnp.bfloat16)

    h = conv1x1_bn(x, p["a"], act="relu")                          # a: 1x1 + BN + ReLU
    h = conv3x3_grouped_bn_relu(h, p["b"], stride, groups)         # b: grouped 3x3
    if p["use_se"]:
        gate = se_gate(h, p["se_w1"], p["se_w2"])                  # SE channel gate
    else:
        gate = jnp.ones((h.shape[0], h.shape[3]), jnp.float32)
    out = conv1x1_gate_res_relu(h, gate, p["c"], res)              # c + gate + res + ReLU
    return jnp.transpose(out, (0, 3, 1, 2))                        # NHWC -> NCHW


# ---------------------------------------------------------------------------
# pure-JAX reference (correctness check only)
# ---------------------------------------------------------------------------

def _ref_conv_bn(x, params, k, stride, groups, act):
    w, scale, bias = params
    pad = (k - 1) // 2
    y = jax.lax.conv_general_dilated(
        x, jnp.transpose(w, (2, 3, 1, 0)),
        window_strides=(stride, stride), padding=[(pad, pad), (pad, pad)],
        dimension_numbers=("NHWC", "HWIO", "NHWC"),
        feature_group_count=groups, precision=jax.lax.Precision.HIGHEST)
    y = y * scale + bias
    return jnp.maximum(y, 0.0) if act == "relu" else y


def ref_block_forward(x_nchw, p):
    x = jnp.transpose(x_nchw, (0, 2, 3, 1)).astype(jnp.float32)
    res = (_ref_conv_bn(x, p["proj"], 1, p["stride"], 1, "none")
           if p["proj"] is not None else x)
    h = _ref_conv_bn(x, p["a"], 1, 1, 1, "relu")
    h = _ref_conv_bn(h, p["b"], 3, p["stride"], p["groups"], "relu")
    if p["use_se"]:
        w1, b1 = p["se_w1"]
        w2, b2 = p["se_w2"]
        pooled = jnp.mean(h, axis=(1, 2))
        g = jnp.maximum(pooled @ w1.T + b1, 0.0)
        g = 1.0 / (1.0 + jnp.exp(-(g @ w2.T + b2)))
        h = h * g[:, None, None, :]
    h = _ref_conv_bn(h, p["c"], 1, 1, 1, "none")
    return jnp.transpose(jnp.maximum(h + res, 0.0), (0, 3, 1, 2))


# ---------------------------------------------------------------------------

if __name__ == "__main__":
    key = jax.random.PRNGKey(0)
    kx1, kp1, kx2, kp2 = jax.random.split(key, 4)

    # BottleneckBlock(w_in=8, w_out=16, bottle_ratio=1, groups=2, stride=2, use_se=True)
    x1 = jax.random.normal(kx1, (2, 8, 16, 16), jnp.float32)       # NCHW, like PyTorch
    p1 = make_block_params(kp1, 8, 16, bottle_ratio=1, groups=2, stride=2, use_se=True)
    out1 = jax.block_until_ready(bottleneck_block_forward(x1, p1))
    ref1 = jax.block_until_ready(ref_block_forward(x1, p1))
    assert out1.shape == (2, 16, 8, 8), out1.shape
    np.testing.assert_allclose(np.asarray(out1), np.asarray(ref1), rtol=5e-2, atol=5e-2)

    # identity-residual variant: w_in == w_out, stride=1, no groups, no SE
    x2 = jax.random.normal(kx2, (2, 16, 8, 8), jnp.float32)
    p2 = make_block_params(kp2, 16, 16, bottle_ratio=1, groups=1, stride=1, use_se=False)
    out2 = jax.block_until_ready(bottleneck_block_forward(x2, p2))
    ref2 = jax.block_until_ready(ref_block_forward(x2, p2))
    assert out2.shape == (2, 16, 8, 8), out2.shape
    np.testing.assert_allclose(np.asarray(out2), np.asarray(ref2), rtol=5e-2, atol=5e-2)

    print("KERNEL_OK")
</pallas_src>

<mosaic_0001>
module attributes {stable_mosaic.version = 11 : i64} {
  func.func @_conv1x1_kernel(%arg0: i32, %arg1: memref<128x8xbf16, #tpu.memory_space<vmem>>, %arg2: memref<8x16xbf16, #tpu.memory_space<vmem>>, %arg3: memref<1x16xf32, #tpu.memory_space<vmem>>, %arg4: memref<1x16xf32, #tpu.memory_space<vmem>>, %arg5: memref<128x16xbf16, #tpu.memory_space<vmem>>) attributes {dimension_semantics = [#tpu.dimension_semantics<parallel>], iteration_bounds = array<i64: 1>, scalar_prefetch = 0 : i64, scratch_operands = 0 : i64, tpu.core_type = #tpu.core_type<tc>, window_params = [{transform_indices = @transform_0, window_bounds = array<i64: 128, 8>}, {pipeline_mode = #tpu.pipeline_mode<synchronous>, transform_indices = @transform_1, window_bounds = array<i64: 8, 16>}, {pipeline_mode = #tpu.pipeline_mode<synchronous>, transform_indices = @transform_2, window_bounds = array<i64: 1, 16>}, {pipeline_mode = #tpu.pipeline_mode<synchronous>, transform_indices = @transform_3, window_bounds = array<i64: 1, 16>}, {transform_indices = @transform_4, window_bounds = array<i64: 128, 16>}]} {
    %c0 = arith.constant 0 : index
    %c0_0 = arith.constant 0 : index
    %0 = vector.load %arg1[%c0, %c0_0] : memref<128x8xbf16, #tpu.memory_space<vmem>>, vector<128x8xbf16>
    %c0_1 = arith.constant 0 : index
    %c0_2 = arith.constant 0 : index
    %1 = vector.load %arg2[%c0_1, %c0_2] : memref<8x16xbf16, #tpu.memory_space<vmem>>, vector<8x16xbf16>
    %cst = arith.constant dense<0.000000e+00> : vector<128x16xf32>
    %2 = tpu.matmul %0, %1, %cst {dimension_numbers = #tpu.dot_dimension_numbers<[1], [0], [0], [1], [0, 0, 1, 1], [], []>} : vector<128x8xbf16>, vector<8x16xbf16>, vector<128x16xf32> -> vector<128x16xf32>
    %c0_3 = arith.constant 0 : index
    %c0_4 = arith.constant 0 : index
    %3 = vector.load %arg3[%c0_3, %c0_4] : memref<1x16xf32, #tpu.memory_space<vmem>>, vector<1x16xf32>
    %4 = vector.broadcast %3 : vector<1x16xf32> to vector<128x16xf32>
    %5 = arith.mulf %2, %4 : vector<128x16xf32>
    %c0_5 = arith.constant 0 : index
    %c0_6 = arith.constant 0 : index
    %6 = vector.load %arg4[%c0_5, %c0_6] : memref<1x16xf32, #tpu.memory_space<vmem>>, vector<1x16xf32>
    %7 = vector.broadcast %6 : vector<1x16xf32> to vector<128x16xf32>
    %8 = arith.addf %5, %7 : vector<128x16xf32>
    %9 = arith.truncf %8 : vector<128x16xf32> to vector<128x16xbf16>
    %c0_7 = arith.constant 0 : index
    %c0_8 = arith.constant 0 : index
    %10 = vector.load %arg5[%c0_7, %c0_8] : memref<128x16xbf16, #tpu.memory_space<vmem>>, vector<128x16xbf16>
    tpu.vector_store %arg5[%c0_7, %c0_8], %9 {strides = array<i32>} : memref<128x16xbf16, #tpu.memory_space<vmem>>, vector<128x16xbf16>,
    return
  }
  func.func @transform_0(%arg0: i32) -> (i32, i32) {
    %c0_i32 = arith.constant 0 : i32
    %c0_i32_0 = arith.constant 0 : i32
    return %arg0, %c0_i32 : i32, i32
  }
  func.func @transform_1(%arg0: i32) -> (i32, i32) {
    %c0_i32 = arith.constant 0 : i32
    %c0_i32_0 = arith.constant 0 : i32
    %c0_i32_1 = arith.constant 0 : i32
    return %c0_i32, %c0_i32_0 : i32, i32
  }
  func.func @transform_2(%arg0: i32) -> (i32, i32) {
    %c0_i32 = arith.constant 0 : i32
    %c0_i32_0 = arith.constant 0 : i32
    %c0_i32_1 = arith.constant 0 : i32
    return %c0_i32, %c0_i32_0 : i32, i32
  }
  func.func @transform_3(%arg0: i32) -> (i32, i32) {
    %c0_i32 = arith.constant 0 : i32
    %c0_i32_0 = arith.constant 0 : i32
    %c0_i32_1 = arith.constant 0 : i32
    return %c0_i32, %c0_i32_0 : i32, i32
  }
  func.func @transform_4(%arg0: i32) -> (i32, i32) {
    %c0_i32 = arith.constant 0 : i32
    %c0_i32_0 = arith.constant 0 : i32
    return %arg0, %c0_i32 : i32, i32
  }
}

</mosaic_0001>

<llo_original>
// kernel: tpu_custom_call.1
$region0: #{tpu_custom_call.1}
  #allocation0 [shape = 'u32[]', space=smem, size = 0x4, offset = 0x4, fixed_abs, tag = 'smem constant byte address 0x4 - core index']
  #allocation1 [shape = 'u32[144,128]{1,0:T(1,128)}', space=vmem, size = 0x12000, scoped, tag = 'internal scratch']
  %s0 = inlined_call_operand.vmem [shape: bf16[128,8], index: 0, kind: input, shape index: {}]
  %s1 = inlined_call_operand.vmem [shape: bf16[8,16], index: 1, kind: input, shape index: {}]
  %s2 = inlined_call_operand.vmem [shape: f32[1,16], index: 2, kind: input, shape index: {}]
  %s3 = inlined_call_operand.vmem [shape: f32[1,16], index: 3, kind: input, shape index: {}]
  %s4 = inlined_call_operand.vmem [shape: bf16[128,16], index: 4, kind: output, shape index: {}]
  %s5 = sld [smem:[#allocation0]]
  $region26: #{tpu_custom_call.1} parent=0
    _
  %s7 = ssub.s32 1, %s5
  %s8 = scalar_select 0, %s7, %s5
  // Predicated region
  $region2: #{tpu_custom_call.1} parent=0 // pred_check
    _
  $region3: #{tpu_custom_call.1} parent=0 // pred_check_branch
    %10 = sbr.rel (0) target = $region5
  $region4: #{tpu_custom_call.1} parent=0 // pred_region
    _
  $region5: #{tpu_custom_call.1} parent=0 // pred_fallthru
    _
  // Predicated region
  $region6: #{tpu_custom_call.1} parent=0 // pred_check
    _
  $region7: #{tpu_custom_call.1} parent=0 // pred_check_branch
    %12 = sbr.rel (0) target = $region9
  $region8: #{tpu_custom_call.1} parent=0 // pred_region
    _
  $region9: #{tpu_custom_call.1} parent=0 // pred_fallthru
    _
  // Predicated region
  $region10: #{tpu_custom_call.1} parent=0 // pred_check
    _
  $region11: #{tpu_custom_call.1} parent=0 // pred_check_branch
    %14 = sbr.rel (0) target = $region13
  $region12: #{tpu_custom_call.1} parent=0 // pred_region
    _
  $region13: #{tpu_custom_call.1} parent=0 // pred_fallthru
    _
  // Predicated region
  $region14: #{tpu_custom_call.1} parent=0 // pred_check
    _
  $region15: #{tpu_custom_call.1} parent=0 // pred_check_branch
    %16 = sbr.rel (0) target = $region17
  $region16: #{tpu_custom_call.1} parent=0 // pred_region
    _
  $region17: #{tpu_custom_call.1} parent=0 // pred_fallthru
    _
  %v18 = vld [vmem:[%s0] sm:$0xf]
  %v19 = vld [vmem:[%s0 + $0x4] sm:$0xf]
  %v20 = vld [vmem:[%s0 + $0x8] sm:$0xf]
  %v21 = vld [vmem:[%s0 + $0xc] sm:$0xf]
  %v22 = vld [vmem:[%s0 + $0x10] sm:$0xf]
  %v23 = vld [vmem:[%s0 + $0x14] sm:$0xf]
  %v24 = vld [vmem:[%s0 + $0x18] sm:$0xf]
  %v25 = vld [vmem:[%s0 + $0x1c] sm:$0xf]
  %v26 = vld [vmem:[%s0 + $0x20] sm:$0xf]
  %v27 = vld [vmem:[%s0 + $0x24] sm:$0xf]
  %v28 = vld [vmem:[%s0 + $0x28] sm:$0xf]
  %v29 = vld [vmem:[%s0 + $0x2c] sm:$0xf]
  %v30 = vld [vmem:[%s0 + $0x30] sm:$0xf]
  %v31 = vld [vmem:[%s0 + $0x34] sm:$0xf]
  %v32 = vld [vmem:[%s0 + $0x38] sm:$0xf]
  %v33 = vld [vmem:[%s0 + $0x3c] sm:$0xf]
  %v34 = vld [vmem:[%s1] sm:$0xf]
  %v51 = vunpack.c.l.b16 %v18
  %v52 = vunpack.c.l.b16 %v19
  %v53 = vunpack.c.l.b16 %v20
  %v54 = vunpack.c.l.b16 %v21
  %v55 = vunpack.c.l.b16 %v22
  %v56 = vunpack.c.l.b16 %v23
  %v57 = vunpack.c.l.b16 %v24
  %v58 = vunpack.c.l.b16 %v25
  %v59 = vunpack.c.l.b16 %v26
  %v60 = vunpack.c.l.b16 %v27
  %v61 = vunpack.c.l.b16 %v28
  %v62 = vunpack.c.l.b16 %v29
  %v63 = vunpack.c.l.b16 %v30
  %v64 = vunpack.c.l.b16 %v31
  %v65 = vunpack.c.l.b16 %v32
  %v66 = vunpack.c.l.b16 %v33
  %v67 = vpack.c.b16 %v52, %v51
  %v68 = vpack.c.b16 %v54, %v53
  %v69 = vpack.c.b16 %v56, %v55
  %v70 = vpack.c.b16 %v58, %v57
  %v71 = vpack.c.b16 %v60, %v59
  %v72 = vpack.c.b16 %v62, %v61
  %v73 = vpack.c.b16 %v64, %v63
  %v74 = vpack.c.b16 %v66, %v65
  %vm75 = vcmask 64512
  %v77 = vsel %vm75, %v67, 0
  %v80 = vsel %vm75, %v68, 0
  %v83 = vsel %vm75, %v69, 0
  %v86 = vsel %vm75, %v70, 0
  %v89 = vsel %vm75, %v71, 0
  %v92 = vsel %vm75, %v72, 0
  %v95 = vsel %vm75, %v73, 0
  %v98 = vsel %vm75, %v74, 0
  %vm100 = vcmask 1043456
  %v102 = vsel %vm100, %v34, 0
  %104 = vmatprep.subr.bf16.mxu0 0
  %105 = vmatpush1.bf16.msra.mxu0 %v102
  %106 = vmatprep.subr.bf16.mxu0 0
  %107 = vmatpush1.bf16.msra.mxu0 0
  %108 = vmatprep.subr.bf16.mxu0 0
  %109 = vmatpush1.bf16.msra.mxu0 0
  %110 = vmatprep.subr.bf16.mxu0 0
  %111 = vmatpush1.bf16.msra.mxu0 0
  %112 = vmatprep.subr.bf16.mxu0 0
  %113 = vmatpush1.bf16.msra.mxu0 0
  %114 = vmatprep.subr.bf16.mxu0 0
  %115 = vmatpush1.bf16.msra.mxu0 0
  %116 = vmatprep.subr.bf16.mxu0 0
  %117 = vmatpush1.bf16.msra.mxu0 0
  %118 = vmatprep.subr.bf16.mxu0 0
  %119 = vmatpush1.bf16.msra.mxu0 0
  %120 = vmatprep.subr.bf16.mxu0 0
  %121 = vmatpush1.bf16.msra.mxu0 0
  %122 = vmatprep.subr.bf16.mxu0 0
  %123 = vmatpush1.bf16.msra.mxu0 0
  %124 = vmatprep.subr.bf16.mxu0 0
  %125 = vmatpush1.bf16.msra.mxu0 0
  %126 = vmatprep.subr.bf16.mxu0 0
  %127 = vmatpush1.bf16.msra.mxu0 0
  %128 = vmatprep.subr.bf16.mxu0 0
  %129 = vmatpush1.bf16.msra.mxu0 0
  %130 = vmatprep.subr.bf16.mxu0 0
  %131 = vmatpush1.bf16.msra.mxu0 0
  %132 = vmatprep.subr.bf16.mxu0 0
  %133 = vmatpush1.bf16.msra.mxu0 0
  %134 = vmatprep.subr.bf16.mxu0 0
  %135 = vmatpush1.bf16.msra.mxu0 0
  %136 = vmatprep.mubr.bf16.mxu0 0
  %137 = vmatmul.mubr.bf16.gmra.mrb[0].mxu0 %v77
  %v138 = vpop.f32.mrb[0].mxu0
  %v139 = vadd.f32 0.0, %v138
  %v140 = vpop.f32.mrb[0].mxu0
  %v141 = vpop.f32.mrb[0].mxu0
  %v142 = vadd.f32 0.0, %v141
  %v143 = vpop.f32.mrb[0].mxu0
  %144 = vmatprep.mubr.bf16.mxu0 0
  %145 = vmatmul.mubr.bf16.gmra.mrb[0].mxu0 %v80
  %v146 = vpop.f32.mrb[0].mxu0
  %v147 = vadd.f32 0.0, %v146
  %v148 = vpop.f32.mrb[0].mxu0
  %v149 = vpop.f32.mrb[0].mxu0
  %v150 = vadd.f32 0.0, %v149
  %v151 = vpop.f32.mrb[0].mxu0
  %152 = vmatprep.mubr.bf16.mxu0 0
  %153 = vmatmul.mubr.bf16.gmra.mrb[0].mxu0 %v83
  %v154 = vpop.f32.mrb[0].mxu0
  %v155 = vadd.f32 0.0, %v154
  %v156 = vpop.f32.mrb[0].mxu0
  %v157 = vpop.f32.mrb[0].mxu0
  %v158 = vadd.f32 0.0, %v157
  %v159 = vpop.f32.mrb[0].mxu0
  %160 = vmatprep.mubr.bf16.mxu0 0
  %161 = vmatmul.mubr.bf16.gmra.mrb[0].mxu0 %v86
  %v162 = vpop.f32.mrb[0].mxu0
  %v163 = vadd.f32 0.0, %v162
  %v164 = vpop.f32.mrb[0].mxu0
  %v165 = vpop.f32.mrb[0].mxu0
  %v166 = vadd.f32 0.0, %v165
  %v167 = vpop.f32.mrb[0].mxu0
  %168 = vmatprep.mubr.bf16.mxu0 0
  %169 = vmatmul.mubr.bf16.gmra.mrb[0].mxu0 %v89
  %v170 = vpop.f32.mrb[0].mxu0
  %v171 = vadd.f32 0.0, %v170
  %v172 = vpop.f32.mrb[0].mxu0
  %v173 = vpop.f32.mrb[0].mxu0
  %v174 = vadd.f32 0.0, %v173
  %v175 = vpop.f32.mrb[0].mxu0
  %176 = vmatprep.mubr.bf16.mxu0 0
  %177 = vmatmul.mubr.bf16.gmra.mrb[0].mxu0 %v92
  %v178 = vpop.f32.mrb[0].mxu0
  %v179 = vadd.f32 0.0, %v178
  %v180 = vpop.f32.mrb[0].mxu0
  %v181 = vpop.f32.mrb[0].mxu0
  %v182 = vadd.f32 0.0, %v181
  %v183 = vpop.f32.mrb[0].mxu0
  %184 = vmatprep.mubr.bf16.mxu0 0
  %185 = vmatmul.mubr.bf16.gmra.mrb[0].mxu0 %v95
  %v186 = vpop.f32.mrb[0].mxu0
  %v187 = vadd.f32 0.0, %v186
  %v188 = vpop.f32.mrb[0].mxu0
  %v189 = vpop.f32.mrb[0].mxu0
  %v190 = vadd.f32 0.0, %v189
  %v191 = vpop.f32.mrb[0].mxu0
  %192 = vmatprep.mubr.bf16.mxu0 0
  %193 = vmatmul.mubr.bf16.gmra.mrb[0].mxu0 %v98
  %v194 = vpop.f32.mrb[0].mxu0
  %v195 = vadd.f32 0.0, %v194
  %v196 = vpop.f32.mrb[0].mxu0
  %v197 = vpop.f32.mrb[0].mxu0
  %v198 = vadd.f32 0.0, %v197
  %v199 = vpop.f32.mrb[0].mxu0
  %200 = vdwg.mxu0
  %v201 = vld [vmem:[%s2] sm:$0x1]
  %v203 = vlaneseq
  %v204 = vshrl.u32 %v203, 7
  %v205 = vsub.s32 0, %v204
  %v206 = vrot.slane %v201, %v205
  %v208 = vmul.f32 %v139, %v206
  %v209 = vmul.f32 %v142, %v206
  %v210 = vmul.f32 %v147, %v206
  %v211 = vmul.f32 %v150, %v206
  %v212 = vmul.f32 %v155, %v206
  %v213 = vmul.f32 %v158, %v206
  %v214 = vmul.f32 %v163, %v206
  %v215 = vmul.f32 %v166, %v206
  %v216 = vmul.f32 %v171, %v206
  %v217 = vmul.f32 %v174, %v206
  %v218 = vmul.f32 %v179, %v206
  %v219 = vmul.f32 %v182, %v206
  %v220 = vmul.f32 %v187, %v206
  %v221 = vmul.f32 %v190, %v206
  %v222 = vmul.f32 %v195, %v206
  %v223 = vmul.f32 %v198, %v206
  %v224 = vld [vmem:[%s3] sm:$0x1]
  %v226 = vlaneseq
  %v227 = vshrl.u32 %v226, 7
  %v228 = vsub.s32 0, %v227
  %v229 = vrot.slane %v224, %v228
  %v231 = vadd.f32 %v208, %v229
  %v232 = vadd.f32 %v209, %v229
  %v233 = vadd.f32 %v210, %v229
  %v234 = vadd.f32 %v211, %v229
  %v235 = vadd.f32 %v212, %v229
  %v236 = vadd.f32 %v213, %v229
  %v237 = vadd.f32 %v214, %v229
  %v238 = vadd.f32 %v215, %v229
  %v239 = vadd.f32 %v216, %v229
  %v240 = vadd.f32 %v217, %v229
  %v241 = vadd.f32 %v218, %v229
  %v242 = vadd.f32 %v219, %v229
  %v243 = vadd.f32 %v220, %v229
  %v244 = vadd.f32 %v221, %v229
  %v245 = vadd.f32 %v222, %v229
  %v246 = vadd.f32 %v223, %v229
  %v247 = vpack.c.bf16 %v232, %v231
  %v248 = vpack.c.bf16 %v234, %v233
  %v249 = vpack.c.bf16 %v236, %v235
  %v250 = vpack.c.bf16 %v238, %v237
  %v251 = vpack.c.bf16 %v240, %v239
  %v252 = vpack.c.bf16 %v242, %v241
  %v253 = vpack.c.bf16 %v244, %v243
  %v254 = vpack.c.bf16 %v246, %v245
  %v263 = vunpack.c.l.b16 %v247
  %v264 = vunpack.c.h.b16 %v247
  %v265 = vunpack.c.l.b16 %v248
  %v266 = vunpack.c.h.b16 %v248
  %v267 = vunpack.c.l.b16 %v249
  %v268 = vunpack.c.h.b16 %v249
  %v269 = vunpack.c.l.b16 %v250
  %v270 = vunpack.c.h.b16 %v250
  %v271 = vunpack.c.l.b16 %v251
  %v272 = vunpack.c.h.b16 %v251
  %v273 = vunpack.c.l.b16 %v252
  %v274 = vunpack.c.h.b16 %v252
  %v275 = vunpack.c.l.b16 %v253
  %v276 = vunpack.c.h.b16 %v253
  %v277 = vunpack.c.l.b16 %v254
  %v278 = vunpack.c.h.b16 %v254
  %v279 = vpack.c.b16 %v263, %v263
  %v280 = vpack.c.b16 %v264, %v264
  %v281 = vpack.c.b16 %v265, %v265
  %v282 = vpack.c.b16 %v266, %v266
  %v283 = vpack.c.b16 %v267, %v267
  %v284 = vpack.c.b16 %v268, %v268
  %v285 = vpack.c.b16 %v269, %v269
  %v286 = vpack.c.b16 %v270, %v270
  %v287 = vpack.c.b16 %v271, %v271
  %v288 = vpack.c.b16 %v272, %v272
  %v289 = vpack.c.b16 %v273, %v273
  %v290 = vpack.c.b16 %v274, %v274
  %v291 = vpack.c.b16 %v275, %v275
  %v292 = vpack.c.b16 %v276, %v276
  %v293 = vpack.c.b16 %v277, %v277
  %v294 = vpack.c.b16 %v278, %v278
  %vm311 = vcmask 125952
  %312 = vst.msk [vmem:[%s4] sm:$0xf] %vm311, %v279
  %313 = vst.msk [vmem:[%s4 + $0x4] sm:$0xf] %vm311, %v280
  %314 = vst.msk [vmem:[%s4 + $0x8] sm:$0xf] %vm311, %v281
  %315 = vst.msk [vmem:[%s4 + $0xc] sm:$0xf] %vm311, %v282
  %316 = vst.msk [vmem:[%s4 + $0x10] sm:$0xf] %vm311, %v283
  %317 = vst.msk [vmem:[%s4 + $0x14] sm:$0xf] %vm311, %v284
  %318 = vst.msk [vmem:[%s4 + $0x18] sm:$0xf] %vm311, %v285
  %319 = vst.msk [vmem:[%s4 + $0x1c] sm:$0xf] %vm311, %v286
  %320 = vst.msk [vmem:[%s4 + $0x20] sm:$0xf] %vm311, %v287
  %321 = vst.msk [vmem:[%s4 + $0x24] sm:$0xf] %vm311, %v288
  %322 = vst.msk [vmem:[%s4 + $0x28] sm:$0xf] %vm311, %v289
  %323 = vst.msk [vmem:[%s4 + $0x2c] sm:$0xf] %vm311, %v290
  %324 = vst.msk [vmem:[%s4 + $0x30] sm:$0xf] %vm311, %v291
  %325 = vst.msk [vmem:[%s4 + $0x34] sm:$0xf] %vm311, %v292
  %326 = vst.msk [vmem:[%s4 + $0x38] sm:$0xf] %vm311, %v293
  %327 = vst.msk [vmem:[%s4 + $0x3c] sm:$0xf] %vm311, %v294
  // Predicated region
  $region18: #{tpu_custom_call.1} parent=0 // pred_check
    _
  $region19: #{tpu_custom_call.1} parent=0 // pred_check_branch
    %329 = sbr.rel (0) target = $region21
  $region20: #{tpu_custom_call.1} parent=0 // pred_region
    _
  $region21: #{tpu_custom_call.1} parent=0 // pred_fallthru
    _
  // Predicated region
  $region22: #{tpu_custom_call.1} parent=0 // pred_check
    _
  $region23: #{tpu_custom_call.1} parent=0 // pred_check_branch
    %331 = sbr.rel (0) target = $region25
  $region24: #{tpu_custom_call.1} parent=0 // pred_region
    _
  $region25: #{tpu_custom_call.1} parent=0 // pred_fallthru
    _

</llo_original>
